<compile_context>
chip_gen: v7x
topology: tpu7x:2x2x1
jax: 0.10.0
libtpu: 0.0.40
codegen_flags: <defaults>
</compile_context>

<pallas_src>
import functools

import jax
import jax.numpy as jnp
from jax.experimental import pallas as pl
from jax.experimental.pallas import tpu as pltpu


def _round_up(x, m):
    return (x + m - 1) // m * m


# --------------------------------------------------------------------------
# Kernels
# --------------------------------------------------------------------------
def _linear_kernel_single_k(x_ref, w_ref, o_ref, *, compute_dtype):
    """Grid step (i, j): o[i, j] = x[i] @ w[j]^T  (whole K in one tile)."""
    o_ref[...] = jax.lax.dot_general(
        x_ref[...].astype(compute_dtype),
        w_ref[...].astype(compute_dtype),
        dimension_numbers=(((1,), (1,)), ((), ())),   # contract K on both
        preferred_element_type=jnp.float32,
    ).astype(o_ref.dtype)


def _linear_kernel_acc(x_ref, w_ref, o_ref, acc_ref, *, compute_dtype):
    """Grid step (i, j, k): acc[i, j] += x[i, k] @ w[j, k]^T.

    x_ref  : (tm, tk)  activation tile
    w_ref  : (tn, tk)  weight tile in native PyTorch (N, K) layout
    o_ref  : (tm, tn)  output tile (resident across the K axis)
    acc_ref: (tm, tn)  float32 VMEM accumulator
    """
    k = pl.program_id(2)

    @pl.when(k == 0)
    def _():
        acc_ref[...] = jnp.zeros_like(acc_ref)

    acc_ref[...] += jax.lax.dot_general(
        x_ref[...].astype(compute_dtype),
        w_ref[...].astype(compute_dtype),
        dimension_numbers=(((1,), (1,)), ((), ())),
        preferred_element_type=jnp.float32,
    )

    @pl.when(k == pl.num_programs(2) - 1)
    def _():
        o_ref[...] = acc_ref[...].astype(o_ref.dtype)


# --------------------------------------------------------------------------
# Wrapper
# --------------------------------------------------------------------------
def linear_forward(x, weight, *, tm=256, tn=512, tk=512, compute_dtype=None):
    """Pallas equivalent of Linear.forward.

    x            : any shape (B, ...) ; flattened to (B, prod(rest))
    weight       : (output_dim, input_dim)  -- PyTorch nn.Linear layout, kept as-is
    compute_dtype: dtype of the MXU operands inside the kernel (e.g.
                   jnp.bfloat16 for the v6e/v7x fast path); accumulation is
                   always float32.  None -> keep x.dtype.
    returns      : (B, output_dim) in x.dtype
    """
    batch = x.shape[0]
    x_flat = x.reshape(batch, -1)              # glue: view(-1, num_flat_features)
    M, K = x_flat.shape
    N, K_w = weight.shape
    assert K == K_w, f"feature mismatch: {K} vs {K_w}"

    out_dtype = x.dtype
    if compute_dtype is None:
        compute_dtype = x.dtype

    # ---- tile sizes: sublane/lane aligned, clamped to padded problem size --
    tm = max(8, _round_up(tm, 8))
    tn = max(128, _round_up(tn, 128))
    tk = max(128, _round_up(tk, 128))

    tm_eff = min(tm, _round_up(M, 8))
    tn_eff = min(tn, _round_up(N, 128))        # lane-dense output (>= 128)
    tk_eff = min(tk, _round_up(K, 128))

    M_pad = _round_up(M, tm_eff)
    N_pad = _round_up(N, tn_eff)
    K_pad = _round_up(K, tk_eff)

    # ---- zero-pad to tile multiples (padded rows/cols contribute zero) -----
    if (M_pad, K_pad) != (M, K):
        x_flat = jnp.pad(x_flat, ((0, M_pad - M), (0, K_pad - K)))
    if (N_pad, K_pad) != (N, K):
        weight = jnp.pad(weight, ((0, N_pad - N), (0, K_pad - K)))

    nk = K_pad // tk_eff
    itemsize = jnp.dtype(out_dtype).itemsize
    cost = pl.CostEstimate(
        flops=2 * M_pad * N_pad * K_pad,
        transcendentals=0,
        bytes_accessed=(M_pad * K_pad + N_pad * K_pad + M_pad * N_pad) * itemsize,
    )

    if nk == 1:
        # -------- single-K fast path: 2-D grid, no accumulator scratch -------
        grid = (M_pad // tm_eff, N_pad // tn_eff)
        kernel = functools.partial(
            _linear_kernel_single_k, compute_dtype=compute_dtype
        )
        out = pl.pallas_call(
            kernel,
            out_shape=jax.ShapeDtypeStruct((M_pad, N_pad), out_dtype),
            grid_spec=pltpu.PrefetchScalarGridSpec(
                num_scalar_prefetch=0,
                grid=grid,
                in_specs=[
                    pl.BlockSpec((tm_eff, tk_eff), lambda i, j: (i, 0)),
                    pl.BlockSpec((tn_eff, tk_eff), lambda i, j: (j, 0)),
                ],
                out_specs=pl.BlockSpec((tm_eff, tn_eff), lambda i, j: (i, j)),
            ),
            compiler_params=pltpu.CompilerParams(
                dimension_semantics=("parallel", "parallel"),
                vmem_limit_bytes=32 * 1024 * 1024,
            ),
            cost_estimate=cost,
        )(x_flat, weight)
    else:
        # -------- generic path: 3-D grid, f32 accumulator across K ----------
        grid = (M_pad // tm_eff, N_pad // tn_eff, nk)
        kernel = functools.partial(_linear_kernel_acc, compute_dtype=compute_dtype)
        out = pl.pallas_call(
            kernel,
            out_shape=jax.ShapeDtypeStruct((M_pad, N_pad), out_dtype),
            grid_spec=pltpu.PrefetchScalarGridSpec(
                num_scalar_prefetch=0,
                grid=grid,
                in_specs=[
                    pl.BlockSpec((tm_eff, tk_eff), lambda i, j, k: (i, k)),
                    pl.BlockSpec((tn_eff, tk_eff), lambda i, j, k: (j, k)),
                ],
                out_specs=pl.BlockSpec((tm_eff, tn_eff), lambda i, j, k: (i, j)),
                scratch_shapes=[pltpu.VMEM((tm_eff, tn_eff), jnp.float32)],
            ),
            compiler_params=pltpu.CompilerParams(
                dimension_semantics=("parallel", "parallel", "arbitrary"),
                vmem_limit_bytes=32 * 1024 * 1024,
            ),
            cost_estimate=cost,
        )(x_flat, weight)

    if (M_pad, N_pad) != (M, N):
        out = out[:M, :N]
    return out


def make_xavier_uniform_weight(key, output_dim, input_dim, dtype=jnp.float32):
    """Deterministic equivalent of init.xavier_uniform_ for a (N, K) weight."""
    fan_in, fan_out = input_dim, output_dim
    limit = (6.0 / (fan_in + fan_out)) ** 0.5
    return jax.random.uniform(
        key, (output_dim, input_dim), dtype=dtype, minval=-limit, maxval=limit
    )


if __name__ == "__main__":
    key = jax.random.PRNGKey(0)
    k_x, k_w = jax.random.split(key)

    # Example: NCHW-shaped input (2, 4, 16, 16) -> flattened feature dim 1024.
    batch, C, H, W = 2, 4, 16, 16
    input_dim = C * H * W          # 1024
    output_dim = 32

    x = jax.random.normal(k_x, (batch, C, H, W), dtype=jnp.float32)
    weight = make_xavier_uniform_weight(k_w, output_dim, input_dim)

    # --- faithful float32 path (matches PyTorch nn.Linear(bias=False)) -----
    out = jax.block_until_ready(linear_forward(x, weight))
    ref = jnp.dot(
        x.reshape(batch, -1), weight.T, precision=jax.lax.Precision.HIGHEST
    )
    assert out.shape == (batch, output_dim)
    assert jnp.allclose(out, ref, atol=2e-3, rtol=2e-3), "f32 mismatch vs reference"

    # --- exercise the multi-K accumulator path on the same data -------------
    out_multi_k = jax.block_until_ready(linear_forward(x, weight, tk=256))
    assert jnp.allclose(out_multi_k, ref, atol=2e-3, rtol=2e-3), (
        "multi-K mismatch vs reference"
    )

    # --- bf16-operand fast path (f32 accumulation): v6e/v7x MXU-peak dtype --
    out_bf16 = jax.block_until_ready(
        linear_forward(x, weight, compute_dtype=jnp.bfloat16)
    )
    ref_bf16 = jnp.dot(
        x.reshape(batch, -1).astype(jnp.bfloat16).astype(jnp.float32),
        weight.astype(jnp.bfloat16).astype(jnp.float32).T,
        precision=jax.lax.Precision.HIGHEST,
    )
    assert jnp.allclose(out_bf16, ref_bf16, atol=1e-2, rtol=1e-2), (
        "bf16 mismatch vs reference"
    )

    print("KERNEL_OK")
</pallas_src>

<mosaic_0001>
module attributes {stable_mosaic.version = 11 : i64} {
  func.func @_linear_kernel_acc(%arg0: i32, %arg1: i32, %arg2: i32, %arg3: memref<8x512xf32, #tpu.memory_space<vmem>>, %arg4: memref<128x512xf32, #tpu.memory_space<vmem>>, %arg5: memref<8x128xf32, #tpu.memory_space<vmem>>, %arg6: memref<8x128xf32, #tpu.memory_space<vmem>>) attributes {dimension_semantics = [#tpu.dimension_semantics<parallel>, #tpu.dimension_semantics<parallel>, #tpu.dimension_semantics<arbitrary>], iteration_bounds = array<i64: 1, 1, 2>, scalar_prefetch = 0 : i64, scratch_operands = 1 : i64, tpu.core_type = #tpu.core_type<tc>, window_params = [{transform_indices = @transform_0, window_bounds = array<i64: 8, 512>}, {transform_indices = @transform_1, window_bounds = array<i64: 128, 512>}, {transform_indices = @transform_2, window_bounds = array<i64: 8, 128>}]} {
    %c0_i32 = arith.constant 0 : i32
    %0 = arith.cmpi eq, %arg2, %c0_i32 : i32
    %1 = arith.extui %0 : i1 to i32
    %c0_i32_0 = arith.constant 0 : i32
    %2 = arith.cmpi ne, %1, %c0_i32_0 : i32
    scf.if %2 {
      %cst_9 = arith.constant 0.000000e+00 : f32
      %12 = vector.broadcast %cst_9 : f32 to vector<8x128xf32>
      %c0_10 = arith.constant 0 : index
      %c0_11 = arith.constant 0 : index
      %13 = vector.load %arg6[%c0_10, %c0_11] : memref<8x128xf32, #tpu.memory_space<vmem>>, vector<8x128xf32>
      tpu.vector_store %arg6[%c0_10, %c0_11], %12 {strides = array<i32>} : memref<8x128xf32, #tpu.memory_space<vmem>>, vector<8x128xf32>,
    } else {
    }
    %c0 = arith.constant 0 : index
    %c0_1 = arith.constant 0 : index
    %3 = vector.load %arg6[%c0, %c0_1] : memref<8x128xf32, #tpu.memory_space<vmem>>, vector<8x128xf32>
    %c0_2 = arith.constant 0 : index
    %c0_3 = arith.constant 0 : index
    %4 = vector.load %arg3[%c0_2, %c0_3] : memref<8x512xf32, #tpu.memory_space<vmem>>, vector<8x512xf32>
    %c0_4 = arith.constant 0 : index
    %c0_5 = arith.constant 0 : index
    %5 = vector.load %arg4[%c0_4, %c0_5] : memref<128x512xf32, #tpu.memory_space<vmem>>, vector<128x512xf32>
    %cst = arith.constant dense<0.000000e+00> : vector<8x128xf32>
    %6 = tpu.matmul %4, %5, %cst {dimension_numbers = #tpu.dot_dimension_numbers<[1], [1], [0], [0], [0, 0, 1, 0], [], []>} : vector<8x512xf32>, vector<128x512xf32>, vector<8x128xf32> -> vector<8x128xf32>
    %7 = arith.addf %3, %6 : vector<8x128xf32>
    %c0_6 = arith.constant 0 : index
    %c0_7 = arith.constant 0 : index
    %8 = vector.load %arg6[%c0_6, %c0_7] : memref<8x128xf32, #tpu.memory_space<vmem>>, vector<8x128xf32>
    tpu.vector_store %arg6[%c0_6, %c0_7], %7 {strides = array<i32>} : memref<8x128xf32, #tpu.memory_space<vmem>>, vector<8x128xf32>,
    %c1_i32 = arith.constant 1 : i32
    %9 = arith.cmpi eq, %arg2, %c1_i32 : i32
    %10 = arith.extui %9 : i1 to i32
    %c0_i32_8 = arith.constant 0 : i32
    %11 = arith.cmpi ne, %10, %c0_i32_8 : i32
    scf.if %11 {
      %c0_9 = arith.constant 0 : index
      %c0_10 = arith.constant 0 : index
      %12 = vector.load %arg6[%c0_9, %c0_10] : memref<8x128xf32, #tpu.memory_space<vmem>>, vector<8x128xf32>
      %c0_11 = arith.constant 0 : index
      %c0_12 = arith.constant 0 : index
      %13 = vector.load %arg5[%c0_11, %c0_12] : memref<8x128xf32, #tpu.memory_space<vmem>>, vector<8x128xf32>
      tpu.vector_store %arg5[%c0_11, %c0_12], %12 {strides = array<i32>} : memref<8x128xf32, #tpu.memory_space<vmem>>, vector<8x128xf32>,
    } else {
    }
    return
  }
  func.func @transform_0(%arg0: i32, %arg1: i32, %arg2: i32) -> (i32, i32) {
    %c0_i32 = arith.constant 0 : i32
    return %arg0, %arg2 : i32, i32
  }
  func.func @transform_1(%arg0: i32, %arg1: i32, %arg2: i32) -> (i32, i32) {
    %c0_i32 = arith.constant 0 : i32
    return %arg1, %arg2 : i32, i32
  }
  func.func @transform_2(%arg0: i32, %arg1: i32, %arg2: i32) -> (i32, i32) {
    %c0_i32 = arith.constant 0 : i32
    return %arg0, %arg1 : i32, i32
  }
}

</mosaic_0001>

<llo_original>
// kernel: tpu_custom_call.1
$region0: #{tpu_custom_call.1}
  #allocation0 [shape = 'u32[]', space=smem, size = 0x4, offset = 0x4, fixed_abs, tag = 'smem constant byte address 0x4 - core index']
  #allocation1 [shape = 'u32[144,128]{1,0:T(1,128)}', space=vmem, size = 0x12000, scoped, tag = 'internal scratch']
  #allocation2 [shape = 'f32[8,128]{1,0:T(8,128)}', space=vmem, size = 0x1000, scoped, tag = 'scratch operand']
  %s0 = inlined_call_operand.hbm [shape: f32[8,1024], index: 0, kind: input, shape index: {}]
  %s1 = inlined_call_operand.hbm [shape: f32[128,1024], index: 1, kind: input, shape index: {}]
  %s2 = inlined_call_operand.hbm [shape: f32[8,128], index: 2, kind: output, shape index: {}]
  %s3 = sld [smem:[#allocation0]]
  $region57: #{tpu_custom_call.1} parent=0
    _
  %s5 = ssub.s32 1, %s3
  %s6 = scalar_select 0, %s5, %s3
  $region1: #{tpu_custom_call.1} parent=0
    #allocation3 [shape = 'u8[32768]{0}', space=vmem, size = 0x8000, scoped, tag = 'input window, operand 0']
    #allocation4 [shape = 's32[2]{0}', space=sflag, size = 0x8, scoped, tag = 'scoped memory for tpu_custom_call.1']
    #allocation5 [shape = 's32[2]{0}', space=sflag, size = 0x8, scoped, tag = 'scoped memory for tpu_custom_call.1']
    #allocation6 [shape = 'u8[524288]{0}', space=vmem, size = 0x80000, scoped, tag = 'input window, operand 1']
    #allocation7 [shape = 's32[2]{0}', space=sflag, size = 0x8, scoped, tag = 'scoped memory for tpu_custom_call.1']
    #allocation8 [shape = 'u8[4096]{0}', space=vmem, size = 0x1000, scoped, tag = 'output window, operand 0, single buffered']
    %7 = vsyncpa [#allocation4], 0
    %s8 = scalar_lea.sflag [#allocation4], 1
    %9 = vsyncpa %s8, 0
    %10 = vsyncpa [#allocation7], 0
    %s11 = scalar_lea.sflag [#allocation7], 1
    %12 = vsyncpa %s11, 0
    %13 = vsyncpa [#allocation5], 0
    loop: start=0, step=1, limit=4
    $region2: #{tpu_custom_call.1} parent=1 // loop_pre_header
      _
    $region3: #{tpu_custom_call.1} parent=1 // loop_header
      %s15 = sphi 0, %s19
      %p16 = scmp.ge.s32.totalorder %s15, 4
      %s22 = sphi 0, %s41
      %s23 = sphi 0, %s37
      %s24 = sphi 0, %s33
      %s25 = sphi 0, %s22
      %s26 = sphi 0, %s23
      %s27 = sphi 0, %s24
      %s28 = sphi 0, %s25
      %s29 = sphi 0, %s26
      %s30 = sphi 0, %s27
      %s46 = sphi 0, %s48
      %s49 = sphi 0, %s46
      %s50 = sphi 0, %s49
      %s66 = sphi 0, %s50
      %s74 = sphi 0, %s76
      %s77 = sphi 0, %s74
      %s78 = sphi 0, %s77
      %s94 = sphi 0, %s78
      %s102 = sphi 0, %s104
      %s105 = sphi 0, %s102
      %s106 = sphi 0, %s105
      %s122 = sphi 0, %s106
    $region4: #{tpu_custom_call.1} parent=1 // loop_header_branch
      %18 = sbr.rel (%p16) target = $region8
    $region5: #{tpu_custom_call.1} parent=1 // loop_body
      %s20 = ssub.s32 %s15, 1
      %s21 = ssub.s32 %s15, 2
      %s31 = sadd.s32 1, %s24
      %p32 = scmp.ge.s32.totalorder %s31, 2
      %s33 = scalar_select %p32, 0, %s31
      %s34 = sadd.s32 1, %s23
      %s35 = scalar_select %p32, %s34, %s23
      %p36 = scmp.ge.s32.totalorder %s35, 1
      %s37 = scalar_select %p36, 0, %s35
      %s38 = sadd.s32 1, %s22
      %s39 = scalar_select %p36, %s38, %s22
      %p40 = scmp.ge.s32.totalorder %s39, 1
      %s41 = scalar_select %p40, 0, %s39
      %s42 = ssub.s32 %s22, %s41
      %s43 = ssub.s32 %s24, %s33
      %s44 = sor.u32 %s42, %s43
      %p45 = scmp.eq.s32.totalorder %s44, 0
      %s47 = sadd.s32 %s46, 1
      %s48 = scalar_select %p45, %s46, %s47
      %p51 = pneg %p45
      %p52 = scmp.eq.s32.totalorder %s15, 1
      %p53 = por %p51, %p52
      %p54 = scmp.ne.s32.totalorder %s46, %s49
      %p55 = scmp.eq.s32.totalorder %s15, 0
      %p56 = por %p54, %p55
      %p57 = scmp.ne.s32.totalorder %s46, %s49
      %p58 = scmp.eq.s32.totalorder %s20, 1
      %p59 = por %p57, %p58
      %p60 = scmp.ne.s32.totalorder %s49, %s50
      %p61 = scmp.eq.s32.totalorder %s20, 0
      %p62 = por %p60, %p61
      %p63 = scmp.ne.s32.totalorder %s49, %s50
      %p64 = scmp.eq.s32.totalorder %s21, 1
      %p65 = por %p63, %p64
      %p67 = scmp.ne.s32.totalorder %s50, %s66
      %p68 = scmp.eq.s32.totalorder %s21, 0
      %p69 = por %p67, %p68
      %s70 = ssub.s32 %s23, %s37
      %s71 = ssub.s32 %s24, %s33
      %s72 = sor.u32 %s70, %s71
      %p73 = scmp.eq.s32.totalorder %s72, 0
      %s75 = sadd.s32 %s74, 1
      %s76 = scalar_select %p73, %s74, %s75
      %p79 = pneg %p73
      %p80 = scmp.eq.s32.totalorder %s15, 1
      %p81 = por %p79, %p80
      %p82 = scmp.ne.s32.totalorder %s74, %s77
      %p83 = scmp.eq.s32.totalorder %s15, 0
      %p84 = por %p82, %p83
      %p85 = scmp.ne.s32.totalorder %s74, %s77
      %p86 = scmp.eq.s32.totalorder %s20, 1
      %p87 = por %p85, %p86
      %p88 = scmp.ne.s32.totalorder %s77, %s78
      %p89 = scmp.eq.s32.totalorder %s20, 0
      %p90 = por %p88, %p89
      %p91 = scmp.ne.s32.totalorder %s77, %s78
      %p92 = scmp.eq.s32.totalorder %s21, 1
      %p93 = por %p91, %p92
      %p95 = scmp.ne.s32.totalorder %s78, %s94
      %p96 = scmp.eq.s32.totalorder %s21, 0
      %p97 = por %p95, %p96
      %s98 = ssub.s32 %s22, %s41
      %s99 = ssub.s32 %s23, %s37
      %s100 = sor.u32 %s98, %s99
      %p101 = scmp.eq.s32.totalorder %s100, 0
      %s103 = sadd.s32 %s102, 1
      %s104 = scalar_select %p101, %s102, %s103
      %p107 = pneg %p101
      %p108 = scmp.eq.s32.totalorder %s15, 1
      %p109 = por %p107, %p108
      %p110 = scmp.ne.s32.totalorder %s102, %s105
      %p111 = scmp.eq.s32.totalorder %s15, 0
      %p112 = por %p110, %p111
      %p113 = scmp.ne.s32.totalorder %s102, %s105
      %p114 = scmp.eq.s32.totalorder %s20, 1
      %p115 = por %p113, %p114
      %p116 = scmp.ne.s32.totalorder %s105, %s106
      %p117 = scmp.eq.s32.totalorder %s20, 0
      %p118 = por %p116, %p117
      %p119 = scmp.ne.s32.totalorder %s105, %s106
      %p120 = scmp.eq.s32.totalorder %s21, 1
      %p121 = por %p119, %p120
      %p123 = scmp.ne.s32.totalorder %s106, %s122
      %p124 = scmp.eq.s32.totalorder %s21, 0
      %p125 = por %p123, %p124
      %p126 = scmp.le.s32.totalorder 1, %s15
      %p127 = scmp.lt.s32.totalorder %s15, 3
      %p128 = pnand %p126, %p127
      %p129 = pneg %p128
      // Predicated region
      $region9: #{tpu_custom_call.1} parent=5 // pred_check
        _
      $region10: #{tpu_custom_call.1} parent=5 // pred_check_branch
        %131 = sbr.rel (%p128) target = $region12
      $region11: #{tpu_custom_call.1} parent=5 // pred_region
        %s132 = ssub.s32 %s15, 1
      $region12: #{tpu_custom_call.1} parent=5 // pred_fallthru
        _
      %p133 = scmp.lt.s32.totalorder %s15, 2
      // Predicated region
      $region13: #{tpu_custom_call.1} parent=5 // pred_check
        %p134 = pneg %p133
      $region14: #{tpu_custom_call.1} parent=5 // pred_check_branch
        %136 = sbr.rel (%p134) target = $region16
      $region15: #{tpu_custom_call.1} parent=5 // pred_region
        // Predicated region
        $region17: #{tpu_custom_call.1} parent=15 // pred_check
          %p137 = pneg %p56
        $region18: #{tpu_custom_call.1} parent=15 // pred_check_branch
          %139 = sbr.rel (%p137) target = $region20
        $region19: #{tpu_custom_call.1} parent=15 // pred_region
          %s140 = sand.u32 %s46, 1
          %s141 = scalar_lea.sflag [#allocation4], %s140
          %s142 = sand.u32 %s46, 1
          %s143 = smul.addr %s142, 32
          %s144 = scalar_lea.vmem [#allocation3], %s143
          %s145 = smul.u32 4, %s24
          %s147 = ssub.s32 512, 512
          %148 = vsyncadd %s141, %s147
          %s149 = smul.addr %s22, 8
          %s150 = sadd.s32 %s145, %s149
          %s151 = smul.addr %s150, 128
          %s152 = scalar_lea.hbm %s0, %s151
          %s154 = sshll.u32 %s144, 4
          %s155 = int_to_ptr.vmem [resolvable:$true] %s154
          %157 = dma.hbm_to_vmem [thread:$0]  %s152, 512, %s155, %s141
        $region20: #{tpu_custom_call.1} parent=15 // pred_fallthru
          _
        // Predicated region
        $region21: #{tpu_custom_call.1} parent=15 // pred_check
          %p158 = pneg %p84
        $region22: #{tpu_custom_call.1} parent=15 // pred_check_branch
          %160 = sbr.rel (%p158) target = $region24
        $region23: #{tpu_custom_call.1} parent=15 // pred_region
          %s161 = sand.u32 %s74, 1
          %s162 = scalar_lea.sflag [#allocation7], %s161
          %s163 = sand.u32 %s74, 1
          %s164 = smul.addr %s163, 512
          %s165 = scalar_lea.vmem [#allocation6], %s164
          %s166 = smul.u32 16, %s23
          %s167 = smul.u32 4, %s24
          %s169 = ssub.s32 8192, 8192
          %170 = vsyncadd %s162, %s169
          %s171 = smul.addr %s166, 8
          %s172 = sadd.s32 %s167, %s171
          %s173 = smul.addr %s172, 128
          %s174 = scalar_lea.hbm %s1, %s173
          %s175 = sshll.u32 %s165, 4
          %s176 = int_to_ptr.vmem [resolvable:$true] %s175
          %181 = dma.hbm_to_vmem [thread:$0]  %s174, 8192, %s176, %s162, 1024, 512, 32
        $region24: #{tpu_custom_call.1} parent=15 // pred_fallthru
          _
      $region16: #{tpu_custom_call.1} parent=5 // pred_fallthru
        _
      %p182 = scmp.le.s32.totalorder 1, %s15
      %p183 = scmp.lt.s32.totalorder %s15, 3
      %p184 = pnand %p182, %p183
      %p185 = pneg %p184
      // Predicated region
      $region25: #{tpu_custom_call.1} parent=5 // pred_check
        _
      $region26: #{tpu_custom_call.1} parent=5 // pred_check_branch
        %187 = sbr.rel (%p184) target = $region28
      $region27: #{tpu_custom_call.1} parent=5 // pred_region
        %s188 = ssub.s32 %s15, 1
        %s189 = sand.u32 %s49, 1
        %s190 = scalar_lea.sflag [#allocation4], %s189
        %s191 = sand.u32 %s49, 1
        %s192 = smul.addr %s191, 32
        %s193 = scalar_lea.vmem [#allocation3], %s192
        // Predicated region
        $region29: #{tpu_custom_call.1} parent=27 // pred_check
          %p194 = pneg %p62
        $region30: #{tpu_custom_call.1} parent=27 // pred_check_branch
          %196 = sbr.rel (%p194) target = $region32
        $region31: #{tpu_custom_call.1} parent=27 // pred_region
          %197 = dma.done %s190, 512
        $region32: #{tpu_custom_call.1} parent=27 // pred_fallthru
          _
        %s198 = sand.u32 %s77, 1
        %s199 = scalar_lea.sflag [#allocation7], %s198
        %s200 = sand.u32 %s77, 1
        %s201 = smul.addr %s200, 512
        %s202 = scalar_lea.vmem [#allocation6], %s201
        // Predicated region
        $region33: #{tpu_custom_call.1} parent=27 // pred_check
          %p203 = pneg %p90
        $region34: #{tpu_custom_call.1} parent=27 // pred_check_branch
          %205 = sbr.rel (%p203) target = $region36
        $region35: #{tpu_custom_call.1} parent=27 // pred_region
          %206 = dma.done %s199, 8192
        $region36: #{tpu_custom_call.1} parent=27 // pred_fallthru
          _
        %s207 = sand.u32 %s49, 1
        %s208 = scalar_lea.sflag [#allocation4], %s207
        %s209 = sand.u32 %s49, 1
        %s210 = smul.addr %s209, 32
        %s211 = scalar_lea.vmem [#allocation3], %s210
        %p212 = pneg %p62
        %p213 = pneg %p59
        %s214 = sand.u32 %s77, 1
        %s215 = scalar_lea.sflag [#allocation7], %s214
        %s216 = sand.u32 %s77, 1
        %s217 = smul.addr %s216, 512
        %s218 = scalar_lea.vmem [#allocation6], %s217
        %p219 = pneg %p90
        %p220 = pneg %p87
        %p221 = pneg %p118
        %p222 = pneg %p115
        %s223 = smul.u32 4, %s27
        %s224 = smul.u32 16, %s26
        %s225 = smul.u32 4, %s27
        %p226 = scmp.eq.s32.totalorder %s27, 0
        // Predicated region
        $region37: #{tpu_custom_call.1} parent=27 // pred_check
          %p227 = pneg %p226
        $region38: #{tpu_custom_call.1} parent=27 // pred_check_branch
          %229 = sbr.rel (%p227) target = $region40
        $region39: #{tpu_custom_call.1} parent=27 // pred_region
          %230 = vst [vmem:[#allocation2] sm:$0xff] 0.0
        $region40: #{tpu_custom_call.1} parent=27 // pred_fallthru
          _
        %v231 = vld [vmem:[#allocation2] sm:$0xff]
        %v232 = vld [vmem:[%s193] sm:$0xff]
        %v233 = vld [vmem:[%s193 + $0x8] sm:$0xff]
        %v234 = vld [vmem:[%s193 + $0x10] sm:$0xff]
        %v235 = vld [vmem:[%s193 + $0x18] sm:$0xff]
        %v236 = vld [vmem:[%s202] sm:$0xff]
        %v237 = vld [vmem:[%s202 + $0x8] sm:$0xff]
        %v238 = vld [vmem:[%s202 + $0x10] sm:$0xff]
        %v239 = vld [vmem:[%s202 + $0x18] sm:$0xff]
        %v240 = vld [vmem:[%s202 + $0x20] sm:$0xff]
        %v241 = vld [vmem:[%s202 + $0x28] sm:$0xff]
        %v242 = vld [vmem:[%s202 + $0x30] sm:$0xff]
        %v243 = vld [vmem:[%s202 + $0x38] sm:$0xff]
        %v244 = vld [vmem:[%s202 + $0x40] sm:$0xff]
        %v245 = vld [vmem:[%s202 + $0x48] sm:$0xff]
        %v246 = vld [vmem:[%s202 + $0x50] sm:$0xff]
        %v247 = vld [vmem:[%s202 + $0x58] sm:$0xff]
        %v248 = vld [vmem:[%s202 + $0x60] sm:$0xff]
        %v249 = vld [vmem:[%s202 + $0x68] sm:$0xff]
        %v250 = vld [vmem:[%s202 + $0x70] sm:$0xff]
        %v251 = vld [vmem:[%s202 + $0x78] sm:$0xff]
        %v252 = vld [vmem:[%s202 + $0x80] sm:$0xff]
        %v253 = vld [vmem:[%s202 + $0x88] sm:$0xff]
        %v254 = vld [vmem:[%s202 + $0x90] sm:$0xff]
        %v255 = vld [vmem:[%s202 + $0x98] sm:$0xff]
        %v256 = vld [vmem:[%s202 + $0xa0] sm:$0xff]
        %v257 = vld [vmem:[%s202 + $0xa8] sm:$0xff]
        %v258 = vld [vmem:[%s202 + $0xb0] sm:$0xff]
        %v259 = vld [vmem:[%s202 + $0xb8] sm:$0xff]
        %v260 = vld [vmem:[%s202 + $0xc0] sm:$0xff]
        %v261 = vld [vmem:[%s202 + $0xc8] sm:$0xff]
        %v262 = vld [vmem:[%s202 + $0xd0] sm:$0xff]
        %v263 = vld [vmem:[%s202 + $0xd8] sm:$0xff]
        %v264 = vld [vmem:[%s202 + $0xe0] sm:$0xff]
        %v265 = vld [vmem:[%s202 + $0xe8] sm:$0xff]
        %v266 = vld [vmem:[%s202 + $0xf0] sm:$0xff]
        %v267 = vld [vmem:[%s202 + $0xf8] sm:$0xff]
        %v268 = vld [vmem:[%s202 + $0x100] sm:$0xff]
        %v269 = vld [vmem:[%s202 + $0x108] sm:$0xff]
        %v270 = vld [vmem:[%s202 + $0x110] sm:$0xff]
        %v271 = vld [vmem:[%s202 + $0x118] sm:$0xff]
        %v272 = vld [vmem:[%s202 + $0x120] sm:$0xff]
        %v273 = vld [vmem:[%s202 + $0x128] sm:$0xff]
        %v274 = vld [vmem:[%s202 + $0x130] sm:$0xff]
        %v275 = vld [vmem:[%s202 + $0x138] sm:$0xff]
        %v276 = vld [vmem:[%s202 + $0x140] sm:$0xff]
        %v277 = vld [vmem:[%s202 + $0x148] sm:$0xff]
        %v278 = vld [vmem:[%s202 + $0x150] sm:$0xff]
        %v279 = vld [vmem:[%s202 + $0x158] sm:$0xff]
        %v280 = vld [vmem:[%s202 + $0x160] sm:$0xff]
        %v281 = vld [vmem:[%s202 + $0x168] sm:$0xff]
        %v282 = vld [vmem:[%s202 + $0x170] sm:$0xff]
        %v283 = vld [vmem:[%s202 + $0x178] sm:$0xff]
        %v284 = vld [vmem:[%s202 + $0x180] sm:$0xff]
        %v285 = vld [vmem:[%s202 + $0x188] sm:$0xff]
        %v286 = vld [vmem:[%s202 + $0x190] sm:$0xff]
        %v287 = vld [vmem:[%s202 + $0x198] sm:$0xff]
        %v288 = vld [vmem:[%s202 + $0x1a0] sm:$0xff]
        %v289 = vld [vmem:[%s202 + $0x1a8] sm:$0xff]
        %v290 = vld [vmem:[%s202 + $0x1b0] sm:$0xff]
        %v291 = vld [vmem:[%s202 + $0x1b8] sm:$0xff]
        %v292 = vld [vmem:[%s202 + $0x1c0] sm:$0xff]
        %v293 = vld [vmem:[%s202 + $0x1c8] sm:$0xff]
        %v294 = vld [vmem:[%s202 + $0x1d0] sm:$0xff]
        %v295 = vld [vmem:[%s202 + $0x1d8] sm:$0xff]
        %v296 = vld [vmem:[%s202 + $0x1e0] sm:$0xff]
        %v297 = vld [vmem:[%s202 + $0x1e8] sm:$0xff]
        %v298 = vld [vmem:[%s202 + $0x1f0] sm:$0xff]
        %v299 = vld [vmem:[%s202 + $0x1f8] sm:$0xff]
        %300 = vmatprep.subr.mxu0 %v237
        %301 = vmatpush1.xpose.msra.mxu0 %v236
        %302 = vmatprep.subr.mxu0 %v241
        %303 = vmatpush1.xpose.msra.mxu0 %v240
        %304 = vmatprep.subr.mxu0 %v245
        %305 = vmatpush1.xpose.msra.mxu0 %v244
        %306 = vmatprep.subr.mxu0 %v249
        %307 = vmatpush1.xpose.msra.mxu0 %v248
        %308 = vmatprep.subr.mxu0 %v253
        %309 = vmatpush1.xpose.msra.mxu0 %v252
        %310 = vmatprep.subr.mxu0 %v257
        %311 = vmatpush1.xpose.msra.mxu0 %v256
        %312 = vmatprep.subr.mxu0 %v261
        %313 = vmatpush1.xpose.msra.mxu0 %v260
        %314 = vmatprep.subr.mxu0 %v265
        %315 = vmatpush1.xpose.msra.mxu0 %v264
        %316 = vmatprep.subr.mxu0 %v269
        %317 = vmatpush1.xpose.msra.mxu0 %v268
        %318 = vmatprep.subr.mxu0 %v273
        %319 = vmatpush1.xpose.msra.mxu0 %v272
        %320 = vmatprep.subr.mxu0 %v277
        %321 = vmatpush1.xpose.msra.mxu0 %v276
        %322 = vmatprep.subr.mxu0 %v281
        %323 = vmatpush1.xpose.msra.mxu0 %v280
        %324 = vmatprep.subr.mxu0 %v285
        %325 = vmatpush1.xpose.msra.mxu0 %v284
        %326 = vmatprep.subr.mxu0 %v289
        %327 = vmatpush1.xpose.msra.mxu0 %v288
        %328 = vmatprep.subr.mxu0 %v293
        %329 = vmatpush1.xpose.msra.mxu0 %v292
        %330 = vmatprep.subr.mxu0 %v297
        %331 = vmatpush1.xpose.msra.mxu0 %v296
        %332 = vmatprep.subr.mxu0 0.0
        %333 = vmatpush1.xpose.msra.mxu0 0.0
        %334 = vmatprep.subr.mxu0 0.0
        %335 = vmatpush1.xpose.msra.mxu0 0.0
        %336 = vmatprep.subr.mxu0 0.0
        %337 = vmatpush1.xpose.msra.mxu0 0.0
        %338 = vmatprep.subr.mxu0 0.0
        %339 = vmatpush1.xpose.msra.mxu0 0.0
        %340 = vmatprep.subr.mxu0 0.0
        %341 = vmatpush1.xpose.msra.mxu0 0.0
        %342 = vmatprep.subr.mxu0 0.0
        %343 = vmatpush1.xpose.msra.mxu0 0.0
        %344 = vmatprep.subr.mxu0 0.0
        %345 = vmatpush1.xpose.msra.mxu0 0.0
        %346 = vmatprep.subr.mxu0 0.0
        %347 = vmatpush1.xpose.msra.mxu0 0.0
        %348 = vmatprep.subr.mxu0 0.0
        %349 = vmatpush1.xpose.msra.mxu0 0.0
        %350 = vmatprep.subr.mxu0 0.0
        %351 = vmatpush1.xpose.msra.mxu0 0.0
        %352 = vmatprep.subr.mxu0 0.0
        %353 = vmatpush1.xpose.msra.mxu0 0.0
        %354 = vmatprep.subr.mxu0 0.0
        %355 = vmatpush1.xpose.msra.mxu0 0.0
        %356 = vmatprep.subr.mxu0 0.0
        %357 = vmatpush1.xpose.msra.mxu0 0.0
        %358 = vmatprep.subr.mxu0 0.0
        %359 = vmatpush1.xpose.msra.mxu0 0.0
        %360 = vmatprep.subr.mxu0 0.0
        %361 = vmatpush1.xpose.msra.mxu0 0.0
        %362 = vmatprep.subr.mxu0 0.0
        %363 = vmatpush1.xpose.msra.mxu0 0.0
        %364 = vmatprep.mubr.f32.mxu0 %v233
        %365 = vmatmul.mubr.f32.gmra.mrb[0].mxu0 %v232
        %v366 = vpop.f32.mrb[0].mxu0
        %v367 = vadd.f32 0.0, %v366
        %v368 = vpop.f32.mrb[0].mxu0
        %369 = vdwg.mxu0
        %370 = vmatprep.subr.mxu0 %v239
        %371 = vmatpush1.xpose.msra.mxu0 %v238
        %372 = vmatprep.subr.mxu0 %v243
        %373 = vmatpush1.xpose.msra.mxu0 %v242
        %374 = vmatprep.subr.mxu0 %v247
        %375 = vmatpush1.xpose.msra.mxu0 %v246
        %376 = vmatprep.subr.mxu0 %v251
        %377 = vmatpush1.xpose.msra.mxu0 %v250
        %378 = vmatprep.subr.mxu0 %v255
        %379 = vmatpush1.xpose.msra.mxu0 %v254
        %380 = vmatprep.subr.mxu0 %v259
        %381 = vmatpush1.xpose.msra.mxu0 %v258
        %382 = vmatprep.subr.mxu0 %v263
        %383 = vmatpush1.xpose.msra.mxu0 %v262
        %384 = vmatprep.subr.mxu0 %v267
        %385 = vmatpush1.xpose.msra.mxu0 %v266
        %386 = vmatprep.subr.mxu0 %v271
        %387 = vmatpush1.xpose.msra.mxu0 %v270
        %388 = vmatprep.subr.mxu0 %v275
        %389 = vmatpush1.xpose.msra.mxu0 %v274
        %390 = vmatprep.subr.mxu0 %v279
        %391 = vmatpush1.xpose.msra.mxu0 %v278
        %392 = vmatprep.subr.mxu0 %v283
        %393 = vmatpush1.xpose.msra.mxu0 %v282
        %394 = vmatprep.subr.mxu0 %v287
        %395 = vmatpush1.xpose.msra.mxu0 %v286
        %396 = vmatprep.subr.mxu0 %v291
        %397 = vmatpush1.xpose.msra.mxu0 %v290
        %398 = vmatprep.subr.mxu0 %v295
        %399 = vmatpush1.xpose.msra.mxu0 %v294
        %400 = vmatprep.subr.mxu0 %v299
        %401 = vmatpush1.xpose.msra.mxu0 %v298
        %402 = vmatprep.subr.mxu0 0.0
        %403 = vmatpush1.xpose.msra.mxu0 0.0
        %404 = vmatprep.subr.mxu0 0.0
        %405 = vmatpush1.xpose.msra.mxu0 0.0
        %406 = vmatprep.subr.mxu0 0.0
        %407 = vmatpush1.xpose.msra.mxu0 0.0
        %408 = vmatprep.subr.mxu0 0.0
        %409 = vmatpush1.xpose.msra.mxu0 0.0
        %410 = vmatprep.subr.mxu0 0.0
        %411 = vmatpush1.xpose.msra.mxu0 0.0
        %412 = vmatprep.subr.mxu0 0.0
        %413 = vmatpush1.xpose.msra.mxu0 0.0
        %414 = vmatprep.subr.mxu0 0.0
        %415 = vmatpush1.xpose.msra.mxu0 0.0
        %416 = vmatprep.subr.mxu0 0.0
        %417 = vmatpush1.xpose.msra.mxu0 0.0
        %418 = vmatprep.subr.mxu0 0.0
        %419 = vmatpush1.xpose.msra.mxu0 0.0
        %420 = vmatprep.subr.mxu0 0.0
        %421 = vmatpush1.xpose.msra.mxu0 0.0
        %422 = vmatprep.subr.mxu0 0.0
        %423 = vmatpush1.xpose.msra.mxu0 0.0
        %424 = vmatprep.subr.mxu0 0.0
        %425 = vmatpush1.xpose.msra.mxu0 0.0
        %426 = vmatprep.subr.mxu0 0.0
        %427 = vmatpush1.xpose.msra.mxu0 0.0
        %428 = vmatprep.subr.mxu0 0.0
        %429 = vmatpush1.xpose.msra.mxu0 0.0
        %430 = vmatprep.subr.mxu0 0.0
        %431 = vmatpush1.xpose.msra.mxu0 0.0
        %432 = vmatprep.subr.mxu0 0.0
        %433 = vmatpush1.xpose.msra.mxu0 0.0
        %434 = vmatprep.mubr.f32.mxu0 %v235
        %435 = vmatmul.mubr.f32.gmra.mrb[0].mxu0 %v234
        %v436 = vpop.f32.mrb[0].mxu0
        %v437 = vadd.f32 %v367, %v436
        %v438 = vpop.f32.mrb[0].mxu0
        %439 = vdwg.mxu0
        %v440 = vadd.f32 %v231, %v437
        %441 = vst [vmem:[#allocation2] sm:$0xff] %v440
        %p442 = scmp.eq.s32.totalorder %s27, 1
        // Predicated region
        $region41: #{tpu_custom_call.1} parent=27 // pred_check
          %p443 = pneg %p442
        $region42: #{tpu_custom_call.1} parent=27 // pred_check_branch
          %445 = sbr.rel (%p443) target = $region44
        $region43: #{tpu_custom_call.1} parent=27 // pred_region
          %v446 = vld [vmem:[#allocation2] sm:$0xff]
          %447 = vst [vmem:[#allocation8] sm:$0xff] %v446
        $region44: #{tpu_custom_call.1} parent=27 // pred_fallthru
          _
        // Predicated region
        $region45: #{tpu_custom_call.1} parent=27 // pred_check
          %p448 = pneg %p115
        $region46: #{tpu_custom_call.1} parent=27 // pred_check_branch
          %450 = sbr.rel (%p448) target = $region48
        $region47: #{tpu_custom_call.1} parent=27 // pred_region
          %s452 = ssub.s32 128, 128
          %453 = vsyncadd [#allocation5], %s452
          %s454 = sadd.s32 %s26, %s25
          %s455 = smul.addr %s454, 128
          %s456 = scalar_lea.hbm %s2, %s455
          %s458 = sshll.u32 [#allocation8], 4
          %s459 = int_to_ptr.vmem [resolvable:$true] %s458
          %461 = dma.vmem_to_hbm [thread:$0]  %s459, 128, %s456, [#allocation5]
        $region48: #{tpu_custom_call.1} parent=27 // pred_fallthru
          _
        // Predicated region
        $region49: #{tpu_custom_call.1} parent=27 // pred_check
          %p462 = pneg %p115
        $region50: #{tpu_custom_call.1} parent=27 // pred_check_branch
          %464 = sbr.rel (%p462) target = $region52
        $region51: #{tpu_custom_call.1} parent=27 // pred_region
          %465 = dma.done [#allocation5], 128
        $region52: #{tpu_custom_call.1} parent=27 // pred_fallthru
          _
      $region28: #{tpu_custom_call.1} parent=5 // pred_fallthru
        _
      %p466 = scmp.le.s32.totalorder 2, %s15
      // Predicated region
      $region53: #{tpu_custom_call.1} parent=5 // pred_check
        %p467 = pneg %p466
      $region54: #{tpu_custom_call.1} parent=5 // pred_check_branch
        %469 = sbr.rel (%p467) target = $region56
      $region55: #{tpu_custom_call.1} parent=5 // pred_region
        %s470 = ssub.s32 %s15, 2
      $region56: #{tpu_custom_call.1} parent=5 // pred_fallthru
        _
    $region6: #{tpu_custom_call.1} parent=1 // loop_footer
      %s19 = sadd.s32 1, %s15
    $region7: #{tpu_custom_call.1} parent=1 // loop_footer_branch
      %14 = sbr.rel target = $region3
    $region8: #{tpu_custom_call.1} parent=1 // loop_exit
      _
    %471 = vsyncpa [#allocation4], 1
    %s472 = scalar_lea.sflag [#allocation4], 1
    %473 = vsyncpa %s472, 1
    %474 = vsyncpa [#allocation7], 1
    %s475 = scalar_lea.sflag [#allocation7], 1
    %476 = vsyncpa %s475, 1
    %477 = vsyncpa [#allocation5], 1
    %s478 = scalar_lea.sflag [#allocation5], 1
    %479 = vsyncpa %s478, 1

</llo_original>
